<compile_context>
chip_gen: v7x
topology: tpu7x:2x2x1
jax: 0.10.0
libtpu: 0.0.40
codegen_flags: <defaults>
</compile_context>

<pallas_src>
import functools
import math

import jax
import jax.numpy as jnp
from jax import lax
from jax.experimental import pallas as pl
from jax.experimental.pallas import tpu as pltpu


def _round_up(v, m):
    return ((v + m - 1) // m) * m


def _round_down(v, m):
    return (v // m) * m


_VMEM_TILE_BUDGET = 28 * 1024 * 1024      # bytes of VMEM spent on row tiles
_VMEM_LIMIT_BYTES = 48 * 1024 * 1024      # scoped VMEM asked from the compiler
_MAX_LOGICAL_ROWS_PER_BLOCK = 4096        # diminishing returns past ~2-4k rows
_STRIP_ROWS = 128                         # packed rows per in-kernel strip
_MAX_PACKED_WEIGHT_BYTES = 8 * 1024 * 1024


# ---------------------------------------------------------------------------
# Fused kernel: y = act_L(... act_1(x @ W1 + b1) ... @ WL + bL)
# refs = (x_ref, w0, b0, w1, b1, ..., o_ref); all blocks already in VMEM.
# ---------------------------------------------------------------------------
def _make_fused_kernel(activations, n_layers, strip_rows, n_strips):
    def _compute_strip(refs, r0):
        x_ref = refs[0]
        o_ref = refs[1 + 2 * n_layers]
        h = x_ref[pl.ds(r0, strip_rows), :]
        for li, act in enumerate(activations):
            w = refs[1 + 2 * li][...]              # VMEM-resident weight block
            b = refs[2 + 2 * li][...]              # (1, width) f32 bias
            h = jnp.dot(h.astype(w.dtype), w,
                        preferred_element_type=jnp.float32) + b
            if act == "tanh":
                h = jnp.tanh(h)                    # EUP slot (free next to MXU)
            elif act == "relu":
                h = jnp.maximum(h, 0.0)            # VPU
            elif act is None:
                pass
            else:
                raise ValueError(f"unsupported activation: {act}")
        o_ref[pl.ds(r0, strip_rows), :] = h.astype(o_ref.dtype)

    def kernel(*refs):
        if n_strips == 1:
            _compute_strip(refs, 0)
        else:
            def body(s, carry):
                _compute_strip(refs, pl.multiple_of(s * strip_rows, strip_rows))
                return carry
            lax.fori_loop(0, n_strips, body, 0)

    return kernel


# ---------------------------------------------------------------------------
# Tiling / packing decisions (all static shape arithmetic)
# ---------------------------------------------------------------------------
def _pack_factor(in_dim, out_dim, n_rows):
    """Smallest P with P*in_dim % 128 == 0 and P*out_dim % 128 == 0."""
    def need(d):
        return 128 // math.gcd(128, d)
    a, b = need(in_dim), need(out_dim)
    p = a * b // math.gcd(a, b)
    if p <= 1:
        return 1
    if n_rows % p != 0:
        # TODO(synk): pad the row count instead of falling back to the
        # lane-sparse layout when n_rows is not a multiple of the pack factor.
        return 1
    return p


def _select_row_tile(n_rows_p, per_row_bytes, weight_bytes, pack):
    """Returns (rows_per_block, rows_per_strip) in packed rows."""
    avail = max(_VMEM_TILE_BUDGET - weight_bytes, 2 * 1024 * 1024)
    cap = max(8, avail // max(per_row_bytes, 1))
    cap = min(cap, max(8, _MAX_LOGICAL_ROWS_PER_BLOCK // pack))
    if n_rows_p <= cap:
        if n_rows_p >= 16:
            tm = _round_up(-(-n_rows_p // 2), 8)   # >=2 blocks for megacore
        else:
            tm = n_rows_p                          # single full-dim block
    else:
        tm = _round_down(cap, 8)
    if tm > _STRIP_ROWS:
        tm = max(_STRIP_ROWS, _round_down(tm, _STRIP_ROWS))
        strip = _STRIP_ROWS
    else:
        strip = tm
    return tm, strip


# ---------------------------------------------------------------------------
# Single fused pallas_call over the row grid
# ---------------------------------------------------------------------------
def _fused_stack(x_packed, packed_params, activations, tm, strip, out_dtype,
                 flops, transcendentals, bytes_accessed):
    n_rows_p, in_w = x_packed.shape
    n_layers = len(packed_params)
    out_w = packed_params[-1][0].shape[1]

    grid = (pl.cdiv(n_rows_p, tm),)

    in_specs = [pl.BlockSpec((tm, in_w), lambda i: (i, 0))]
    flat_args = [x_packed]
    for (w, b) in packed_params:
        kl, nl = w.shape
        # Whole-array blocks with a constant index_map -> stay VMEM-resident.
        in_specs.append(pl.BlockSpec((kl, nl), lambda i: (0, 0)))
        in_specs.append(pl.BlockSpec((1, nl), lambda i: (0, 0)))
        flat_args.append(w)
        flat_args.append(b)

    out_spec = pl.BlockSpec((tm, out_w), lambda i: (i, 0))

    kernel = _make_fused_kernel(tuple(activations), n_layers, strip, tm // strip)

    return pl.pallas_call(
        kernel,
        out_shape=jax.ShapeDtypeStruct((n_rows_p, out_w), out_dtype),
        grid_spec=pl.GridSpec(grid=grid, in_specs=in_specs, out_specs=out_spec),
        compiler_params=pltpu.CompilerParams(
            dimension_semantics=("parallel",),
            vmem_limit_bytes=_VMEM_LIMIT_BYTES,
        ),
        cost_estimate=pl.CostEstimate(
            flops=int(flops),
            transcendentals=int(transcendentals),
            bytes_accessed=int(bytes_accessed),
        ),
    )(*flat_args)


# ---------------------------------------------------------------------------
# StackedDense forward (fused, jitted)
# ---------------------------------------------------------------------------
@functools.partial(jax.jit, static_argnames=("activations", "stream_dtype"))
def stacked_dense_forward(x, params, activations, stream_dtype=jnp.float32):
    """params: tuple of (W[K, Nout], b[Nout]); activations: tuple of None/'tanh'/'relu'.

    stream_dtype: HBM dtype of x / output / weights.  Keep f32 for exact parity
    with the PyTorch module; use jnp.bfloat16 on v6e/v7x to halve HBM traffic
    (accumulation and tanh stay f32 inside the kernel).
    """
    n_layers = len(params)
    assert len(activations) == n_layers, "need one activation (or None) per layer"

    lead = x.shape[:-1]
    in_dim = x.shape[-1]
    out_dim = params[-1][0].shape[1]
    n_rows = 1
    for d in lead:
        n_rows *= d

    x2d = x.reshape(n_rows, in_dim)
    stream = jnp.dtype(stream_dtype)

    # ---- lane-dense packing factor -------------------------------------
    pack = _pack_factor(in_dim, out_dim, n_rows)
    w_bytes = sum(4 * (pack * w.shape[0]) * (pack * w.shape[1]) + 4 * pack * w.shape[1]
                  for (w, _b) in params)
    if pack > 1 and w_bytes > _MAX_PACKED_WEIGHT_BYTES:
        pack = 1
        w_bytes = sum(4 * w.shape[0] * w.shape[1] + 4 * w.shape[1]
                      for (w, _b) in params)

    # ---- build (optionally block-diagonal) operands ---------------------
    eye = jnp.eye(pack, dtype=jnp.float32)
    packed_params = []
    widths = []
    for (w, b) in params:
        w = w.astype(jnp.float32)
        b = b.astype(jnp.float32)
        if pack > 1:
            w = jnp.kron(eye, w)                   # block-diagonal expansion
            b = jnp.tile(b, pack)
        packed_params.append((w.astype(stream), b.reshape(1, -1)))
        widths.append(w.shape[1])

    x_stream = x2d.astype(stream)
    if pack > 1:
        # Free row-major reshape: pack `pack` logical rows per 128-lane row.
        x_packed = x_stream.reshape(n_rows // pack, pack * in_dim)
    else:
        x_packed = x_stream
    n_rows_p, in_w = x_packed.shape
    out_w = packed_params[-1][0].shape[1]

    # ---- VMEM-budget-driven row tile ------------------------------------
    per_row_bytes = (2 * stream.itemsize * (in_w + out_w)   # double-buffered in/out
                     + 4 * (in_w + sum(widths)))            # live f32 intermediates
    tm, strip = _select_row_tile(n_rows_p, per_row_bytes, w_bytes, pack)

    # ---- advisory cost estimate -----------------------------------------
    flops = 0
    transcendentals = 0
    bytes_accessed = stream.itemsize * n_rows_p * (in_w + out_w) + w_bytes
    d_prev = in_dim
    for (w, _b), act in zip(params, activations):
        d_out = w.shape[1]
        flops += 2 * n_rows * pack * d_prev * d_out
        if act == "tanh":
            transcendentals += n_rows * d_out
        d_prev = d_out

    out_packed = _fused_stack(x_packed, tuple(packed_params), activations,
                              tm, strip, stream, flops, transcendentals,
                              bytes_accessed)
    out2d = out_packed.reshape(n_rows, out_dim)
    return out2d.reshape(*lead, out_dim)


# ---------------------------------------------------------------------------
# Deterministic parameter init matching the PyTorch module:
#   weight: xavier_uniform (PyTorch weight is (out,in); we store (in,out))
#   bias:   zeros
# ---------------------------------------------------------------------------
def init_stacked_dense_params(key, in_dimension, units):
    dims = [in_dimension] + list(units)
    params = []
    for i in range(1, len(dims)):
        fan_in, fan_out = dims[i - 1], dims[i]
        key, sub = jax.random.split(key)
        bound = math.sqrt(6.0 / (fan_in + fan_out))
        w_torch = jax.random.uniform(
            sub, (fan_out, fan_in), jnp.float32, minval=-bound, maxval=bound
        )
        params.append((w_torch.T, jnp.zeros((fan_out,), jnp.float32)))
    return tuple(params)


if __name__ == "__main__":
    # StackedDense(in_dimension=32, units=[64, 32], activation_fns=[nn.Tanh, None])
    in_dimension = 32
    units = (64, 32)
    activations = ("tanh", None)

    key = jax.random.PRNGKey(0)
    pkey, xkey = jax.random.split(key)
    params = init_stacked_dense_params(pkey, in_dimension, units)

    def reference(x):
        h = x.reshape(-1, in_dimension).astype(jnp.float32)
        for (w, b), act in zip(params, activations):
            h = h @ w + b
            if act == "tanh":
                h = jnp.tanh(h)
            elif act == "relu":
                h = jnp.maximum(h, 0.0)
        return h.reshape(*x.shape[:-1], units[-1])

    # 1) small shape from the module spec: lane-dense packed path, single block
    x = jax.random.normal(xkey, (2, 8, in_dimension), jnp.float32)
    out = jax.block_until_ready(stacked_dense_forward(x, params, activations))
    assert out.shape == (2, 8, units[-1])
    assert jnp.allclose(out, reference(x), atol=1e-5, rtol=1e-5)

    # 2) rows not divisible by the pack factor -> plain-layout fallback path
    x_odd = jax.random.normal(jax.random.PRNGKey(1), (3, 5, in_dimension), jnp.float32)
    out_odd = jax.block_until_ready(stacked_dense_forward(x_odd, params, activations))
    assert jnp.allclose(out_odd, reference(x_odd), atol=1e-5, rtol=1e-5)

    # 3) larger row count -> multi-block "parallel" grid + in-kernel strip loop
    x_big = jax.random.normal(jax.random.PRNGKey(2), (16, 128, in_dimension), jnp.float32)
    out_big = jax.block_until_ready(stacked_dense_forward(x_big, params, activations))
    assert jnp.allclose(out_big, reference(x_big), atol=1e-5, rtol=1e-5)

    # 4) bf16 HBM streaming (v6e/v7x byte-halving path); f32 accumulation/tanh.
    out_bf16 = jax.block_until_ready(
        stacked_dense_forward(x, params, activations, stream_dtype=jnp.bfloat16))
    assert jnp.allclose(out_bf16.astype(jnp.float32), reference(x), atol=3e-2, rtol=3e-2)

    print("KERNEL_OK")
</pallas_src>

<mosaic_0001>
module attributes {stable_mosaic.version = 11 : i64} {
  func.func @kernel(%arg0: i32, %arg1: memref<4x128xf32, #tpu.memory_space<vmem>>, %arg2: memref<128x256xf32, #tpu.memory_space<vmem>>, %arg3: memref<1x256xf32, #tpu.memory_space<vmem>>, %arg4: memref<256x128xf32, #tpu.memory_space<vmem>>, %arg5: memref<1x128xf32, #tpu.memory_space<vmem>>, %arg6: memref<4x128xf32, #tpu.memory_space<vmem>>) attributes {dimension_semantics = [#tpu.dimension_semantics<parallel>], iteration_bounds = array<i64: 1>, scalar_prefetch = 0 : i64, scratch_operands = 0 : i64, tpu.core_type = #tpu.core_type<tc>, window_params = [{transform_indices = @transform_0, window_bounds = array<i64: 4, 128>}, {pipeline_mode = #tpu.pipeline_mode<synchronous>, transform_indices = @transform_1, window_bounds = array<i64: 128, 256>}, {pipeline_mode = #tpu.pipeline_mode<synchronous>, transform_indices = @transform_2, window_bounds = array<i64: 1, 256>}, {pipeline_mode = #tpu.pipeline_mode<synchronous>, transform_indices = @transform_3, window_bounds = array<i64: 256, 128>}, {pipeline_mode = #tpu.pipeline_mode<synchronous>, transform_indices = @transform_4, window_bounds = array<i64: 1, 128>}, {transform_indices = @transform_5, window_bounds = array<i64: 4, 128>}]} {
    %c0 = arith.constant 0 : index
    %c0_0 = arith.constant 0 : index
    %0 = vector.load %arg1[%c0, %c0_0] : memref<4x128xf32, #tpu.memory_space<vmem>>, vector<4x128xf32>
    %c0_1 = arith.constant 0 : index
    %c0_2 = arith.constant 0 : index
    %1 = vector.load %arg2[%c0_1, %c0_2] : memref<128x256xf32, #tpu.memory_space<vmem>>, vector<128x256xf32>
    %c0_3 = arith.constant 0 : index
    %c0_4 = arith.constant 0 : index
    %2 = vector.load %arg3[%c0_3, %c0_4] : memref<1x256xf32, #tpu.memory_space<vmem>>, vector<1x256xf32>
    %cst = arith.constant dense<0.000000e+00> : vector<4x256xf32>
    %3 = tpu.matmul %0, %1, %cst {dimension_numbers = #tpu.dot_dimension_numbers<[1], [0], [0], [1], [0, 0, 1, 1], [], []>} : vector<4x128xf32>, vector<128x256xf32>, vector<4x256xf32> -> vector<4x256xf32>
    %4 = vector.broadcast %2 : vector<1x256xf32> to vector<4x256xf32>
    %5 = arith.addf %3, %4 : vector<4x256xf32>
    %6 = math.tanh %5 : vector<4x256xf32>
    %c0_5 = arith.constant 0 : index
    %c0_6 = arith.constant 0 : index
    %7 = vector.load %arg4[%c0_5, %c0_6] : memref<256x128xf32, #tpu.memory_space<vmem>>, vector<256x128xf32>
    %c0_7 = arith.constant 0 : index
    %c0_8 = arith.constant 0 : index
    %8 = vector.load %arg5[%c0_7, %c0_8] : memref<1x128xf32, #tpu.memory_space<vmem>>, vector<1x128xf32>
    %cst_9 = arith.constant dense<0.000000e+00> : vector<4x128xf32>
    %9 = tpu.matmul %6, %7, %cst_9 {dimension_numbers = #tpu.dot_dimension_numbers<[1], [0], [0], [1], [0, 0, 1, 1], [], []>} : vector<4x256xf32>, vector<256x128xf32>, vector<4x128xf32> -> vector<4x128xf32>
    %10 = vector.broadcast %8 : vector<1x128xf32> to vector<4x128xf32>
    %11 = arith.addf %9, %10 : vector<4x128xf32>
    %c0_10 = arith.constant 0 : index
    %c0_11 = arith.constant 0 : index
    %12 = vector.load %arg6[%c0_10, %c0_11] : memref<4x128xf32, #tpu.memory_space<vmem>>, vector<4x128xf32>
    tpu.vector_store %arg6[%c0_10, %c0_11], %11 {strides = array<i32>} : memref<4x128xf32, #tpu.memory_space<vmem>>, vector<4x128xf32>,
    return
  }
  func.func @transform_0(%arg0: i32) -> (i32, i32) {
    %c0_i32 = arith.constant 0 : i32
    %c0_i32_0 = arith.constant 0 : i32
    return %arg0, %c0_i32 : i32, i32
  }
  func.func @transform_1(%arg0: i32) -> (i32, i32) {
    %c0_i32 = arith.constant 0 : i32
    %c0_i32_0 = arith.constant 0 : i32
    %c0_i32_1 = arith.constant 0 : i32
    return %c0_i32, %c0_i32_0 : i32, i32
  }
  func.func @transform_2(%arg0: i32) -> (i32, i32) {
    %c0_i32 = arith.constant 0 : i32
    %c0_i32_0 = arith.constant 0 : i32
    %c0_i32_1 = arith.constant 0 : i32
    return %c0_i32, %c0_i32_0 : i32, i32
  }
  func.func @transform_3(%arg0: i32) -> (i32, i32) {
    %c0_i32 = arith.constant 0 : i32
    %c0_i32_0 = arith.constant 0 : i32
    %c0_i32_1 = arith.constant 0 : i32
    return %c0_i32, %c0_i32_0 : i32, i32
  }
  func.func @transform_4(%arg0: i32) -> (i32, i32) {
    %c0_i32 = arith.constant 0 : i32
    %c0_i32_0 = arith.constant 0 : i32
    %c0_i32_1 = arith.constant 0 : i32
    return %c0_i32, %c0_i32_0 : i32, i32
  }
  func.func @transform_5(%arg0: i32) -> (i32, i32) {
    %c0_i32 = arith.constant 0 : i32
    %c0_i32_0 = arith.constant 0 : i32
    return %arg0, %c0_i32 : i32, i32
  }
}

</mosaic_0001>

<llo_original>
// kernel: tile.13
$region0: #{tile.13}
  #allocation0 [shape = 's32[1]{0}', space=sflag, size = 0x4, scoped, tag = 'scoped memory for tile.13']
  %s0 = inlined_call_operand.vmem [shape: f32[64], index: 0, kind: input, shape index: {}]
  %s1 = inlined_call_operand.vmem [shape: f32[4,64], index: 1, kind: output, shape index: {}]
  // Predicated region
  $region2: #{tile.13} parent=0 // pred_check
    _
  $region3: #{tile.13} parent=0 // pred_check_branch
    %3 = sbr.rel (0) target = $region5
  $region4: #{tile.13} parent=0 // pred_region
    _
  $region5: #{tile.13} parent=0 // pred_fallthru
    _
  %v4 = vld [vmem:[%s0] ss:$0 sm:$0xff]
  %5 = vst [vmem:[%s1] sm:$0xf] %v4

// kernel: tile.14
$region0: #{tile.14}
  %s0 = inlined_call_operand.vmem [shape: f32[4,64], index: 0, kind: input, shape index: {}]
  %s1 = inlined_call_operand.vmem [shape: f32[1,256], index: 1, kind: output, shape index: {}]
  $region1: #{tile.14} parent=0
    #allocation0 [shape = 'u8[8192]{0}', space=vmem, size = 0x2000, scoped, tag = 'scoped mem for output reshape']
    #allocation1 [shape = 'u8[4096]{0}', space=vmem, size = 0x1000, scoped, tag = 'scoped mem for input reshape']
    %s3 = sshllo.u32 0, 4
    %v4 = vld [vmem:[%s0] sm:%s3]
    %5 = vst [vmem:[#allocation1] sm:%s3] %v4
    %s6 = smov 3
    %v7 = vld [vmem:[#allocation1] ss:$2 sm:%s6]
    %vm8 = vcmask 523264
    %9 = vst.msk [vmem:[#allocation0] ss:$8 sm:$0x3] %vm8, %v7
    %s10 = scalar_lea.vmem [#allocation1], 1
    %s11 = smov 3
    %v12 = vld [vmem:[%s10] ss:$2 sm:%s11]
    %13 = vrot.lane.b32.xlu0 %v12, 64
    %v14 = vpop.permute.xlu0 %13
    %vm15 = vcmask 1048064
    %16 = vst.msk [vmem:[#allocation0] ss:$8 sm:$0x3] %vm15, %v14
    %s18 = sshllo.u32 0, 1
    %v20 = vld [vmem:[#allocation0] sm:%s18]
    %s21 = sshllo.u32 0, 1
    %22 = vst [vmem:[%s1] sm:%s21] %v20
    %s23 = scalar_lea.vmem [#allocation0], 8
    %v24 = vld [vmem:[%s23] sm:%s18]
    %s25 = sshllo.u32 0, 1
    %s26 = scalar_lea.vmem %s1, 1
    %27 = vst [vmem:[%s26] sm:%s25] %v24

// kernel: tile.18
$region0: #{tile.18}
  #allocation0 [shape = 's32[1]{0}', space=sflag, size = 0x4, scoped, tag = 'scoped memory for tile.18']
  %s0 = inlined_call_operand.vmem [shape: f32[32], index: 0, kind: input, shape index: {}]
  %s1 = inlined_call_operand.vmem [shape: f32[4,32], index: 1, kind: output, shape index: {}]
  // Predicated region
  $region2: #{tile.18} parent=0 // pred_check
    _
  $region3: #{tile.18} parent=0 // pred_check_branch
    %3 = sbr.rel (0) target = $region5
  $region4: #{tile.18} parent=0 // pred_region
    _
  $region5: #{tile.18} parent=0 // pred_fallthru
    _
  %v4 = vld [vmem:[%s0] ss:$0 sm:$0xff]
  %5 = vst [vmem:[%s1] sm:$0xf] %v4

// kernel: tile.19
$region0: #{tile.19}
  %s0 = inlined_call_operand.vmem [shape: f32[4,32], index: 0, kind: input, shape index: {}]
  %s1 = inlined_call_operand.vmem [shape: f32[1,128], index: 1, kind: output, shape index: {}]
  $region1: #{tile.19} parent=0
    #allocation0 [shape = 'u8[4096]{0}', space=vmem, size = 0x1000, scoped, tag = 'scoped mem for output reshape']
    #allocation1 [shape = 'u8[4096]{0}', space=vmem, size = 0x1000, scoped, tag = 'scoped mem for input reshape']
    %s3 = sshllo.u32 0, 4
    %v4 = vld [vmem:[%s0] sm:%s3]
    %5 = vst [vmem:[#allocation1] sm:%s3] %v4
    %v6 = vld [vmem:[#allocation1] sm:$0x1]
    %vm7 = vcmask 261120
    %8 = vst.msk [vmem:[#allocation0] sm:$0x1] %vm7, %v6
    %s9 = scalar_lea.vmem [#allocation1], 3
    %v10 = vld [vmem:[%s9] sm:$0x1]
    %11 = vrot.lane.b32.xlu0 %v10, 96
    %v12 = vpop.permute.xlu0 %11
    %vm13 = vcmask 1048320
    %14 = vst.msk [vmem:[#allocation0] sm:$0x1] %vm13, %v12
    %s15 = scalar_lea.vmem [#allocation1], 2
    %v16 = vld [vmem:[%s15] sm:$0x1]
    %17 = vrot.lane.b32.xlu0 %v16, 64
    %v18 = vpop.permute.xlu0 %17
    %vm19 = vcmask 785920
    %20 = vst.msk [vmem:[#allocation0] sm:$0x1] %vm19, %v18
    %s21 = scalar_lea.vmem [#allocation1], 1
    %v22 = vld [vmem:[%s21] sm:$0x1]
    %23 = vrot.lane.b32.xlu0 %v22, 32
    %v24 = vpop.permute.xlu0 %23
    %vm25 = vcmask 523520
    %26 = vst.msk [vmem:[#allocation0] sm:$0x1] %vm25, %v24
    %s28 = sshllo.u32 0, 1
    %v30 = vld [vmem:[#allocation0] sm:%s28]
    %s31 = sshllo.u32 0, 1
    %32 = vst [vmem:[%s1] sm:%s31] %v30

// kernel: stacked_dense_forward.1
$region0: #{stacked_dense_forward.1}
  #allocation0 [shape = 'u32[]', space=smem, size = 0x4, offset = 0x4, fixed_abs, tag = 'smem constant byte address 0x4 - core index']
  #allocation1 [shape = 'u32[144,128]{1,0:T(1,128)}', space=vmem, size = 0x12000, scoped, tag = 'internal scratch']
  %s0 = inlined_call_operand.vmem [shape: f32[4,128], index: 0, kind: input, shape index: {}]
  %s1 = inlined_call_operand.vmem [shape: f32[128,256], index: 1, kind: input, shape index: {}]
  %s2 = inlined_call_operand.vmem [shape: f32[1,256], index: 2, kind: input, shape index: {}]
  %s3 = inlined_call_operand.vmem [shape: f32[256,128], index: 3, kind: input, shape index: {}]
  %s4 = inlined_call_operand.vmem [shape: f32[1,128], index: 4, kind: input, shape index: {}]
  %s5 = inlined_call_operand.vmem [shape: f32[4,128], index: 5, kind: output, shape index: {}]
  %s6 = sld [smem:[#allocation0]]
  $region30: #{stacked_dense_forward.1} parent=0
    _
  %s8 = ssub.s32 1, %s6
  %s9 = scalar_select 0, %s8, %s6
  // Predicated region
  $region2: #{stacked_dense_forward.1} parent=0 // pred_check
    _
  $region3: #{stacked_dense_forward.1} parent=0 // pred_check_branch
    %11 = sbr.rel (0) target = $region5
  $region4: #{stacked_dense_forward.1} parent=0 // pred_region
    _
  $region5: #{stacked_dense_forward.1} parent=0 // pred_fallthru
    _
  // Predicated region
  $region6: #{stacked_dense_forward.1} parent=0 // pred_check
    _
  $region7: #{stacked_dense_forward.1} parent=0 // pred_check_branch
    %13 = sbr.rel (0) target = $region9
  $region8: #{stacked_dense_forward.1} parent=0 // pred_region
    _
  $region9: #{stacked_dense_forward.1} parent=0 // pred_fallthru
    _
  // Predicated region
  $region10: #{stacked_dense_forward.1} parent=0 // pred_check
    _
  $region11: #{stacked_dense_forward.1} parent=0 // pred_check_branch
    %15 = sbr.rel (0) target = $region13
  $region12: #{stacked_dense_forward.1} parent=0 // pred_region
    _
  $region13: #{stacked_dense_forward.1} parent=0 // pred_fallthru
    _
  // Predicated region
  $region14: #{stacked_dense_forward.1} parent=0 // pred_check
    _
  $region15: #{stacked_dense_forward.1} parent=0 // pred_check_branch
    %17 = sbr.rel (0) target = $region17
  $region16: #{stacked_dense_forward.1} parent=0 // pred_region
    _
  $region17: #{stacked_dense_forward.1} parent=0 // pred_fallthru
    _
  // Predicated region
  $region18: #{stacked_dense_forward.1} parent=0 // pred_check
    _
  $region19: #{stacked_dense_forward.1} parent=0 // pred_check_branch
    %19 = sbr.rel (0) target = $region21
  $region20: #{stacked_dense_forward.1} parent=0 // pred_region
    _
  $region21: #{stacked_dense_forward.1} parent=0 // pred_fallthru
    _
  %v20 = vld [vmem:[%s0] sm:$0xf]
  %v21 = vld [vmem:[%s1] sm:$0xff]
  %v22 = vld [vmem:[%s1 + $0x8] sm:$0xff]
  %v23 = vld [vmem:[%s1 + $0x10] sm:$0xff]
  %v24 = vld [vmem:[%s1 + $0x18] sm:$0xff]
  %v25 = vld [vmem:[%s1 + $0x20] sm:$0xff]
  %v26 = vld [vmem:[%s1 + $0x28] sm:$0xff]
  %v27 = vld [vmem:[%s1 + $0x30] sm:$0xff]
  %v28 = vld [vmem:[%s1 + $0x38] sm:$0xff]
  %v29 = vld [vmem:[%s1 + $0x40] sm:$0xff]
  %v30 = vld [vmem:[%s1 + $0x48] sm:$0xff]
  %v31 = vld [vmem:[%s1 + $0x50] sm:$0xff]
  %v32 = vld [vmem:[%s1 + $0x58] sm:$0xff]
  %v33 = vld [vmem:[%s1 + $0x60] sm:$0xff]
  %v34 = vld [vmem:[%s1 + $0x68] sm:$0xff]
  %v35 = vld [vmem:[%s1 + $0x70] sm:$0xff]
  %v36 = vld [vmem:[%s1 + $0x78] sm:$0xff]
  %v37 = vld [vmem:[%s1 + $0x80] sm:$0xff]
  %v38 = vld [vmem:[%s1 + $0x88] sm:$0xff]
  %v39 = vld [vmem:[%s1 + $0x90] sm:$0xff]
  %v40 = vld [vmem:[%s1 + $0x98] sm:$0xff]
  %v41 = vld [vmem:[%s1 + $0xa0] sm:$0xff]
  %v42 = vld [vmem:[%s1 + $0xa8] sm:$0xff]
  %v43 = vld [vmem:[%s1 + $0xb0] sm:$0xff]
  %v44 = vld [vmem:[%s1 + $0xb8] sm:$0xff]
  %v45 = vld [vmem:[%s1 + $0xc0] sm:$0xff]
  %v46 = vld [vmem:[%s1 + $0xc8] sm:$0xff]
  %v47 = vld [vmem:[%s1 + $0xd0] sm:$0xff]
  %v48 = vld [vmem:[%s1 + $0xd8] sm:$0xff]
  %v49 = vld [vmem:[%s1 + $0xe0] sm:$0xff]
  %v50 = vld [vmem:[%s1 + $0xe8] sm:$0xff]
  %v51 = vld [vmem:[%s1 + $0xf0] sm:$0xff]
  %v52 = vld [vmem:[%s1 + $0xf8] sm:$0xff]
  %v53 = vld [vmem:[%s2] sm:$0x3]
  %v55 = vlaneseq
  %v56 = vshrl.u32 %v55, 7
  %v57 = vsub.s32 0, %v56
  %v58 = vrot.slane %v53, %v57
  %v59 = vlaneseq
  %v60 = vshrl.u32 %v59, 7
  %v61 = vsub.s32 1, %v60
  %v62 = vrot.slane %v53, %v61
  %65 = vmatprep.subr.mxu0 %v22
  %66 = vmatpush1.msra.mxu0 %v21
  %67 = vmatprep.subr.mxu0 %v24
  %68 = vmatpush1.msra.mxu0 %v23
  %69 = vmatprep.subr.mxu0 %v26
  %70 = vmatpush1.msra.mxu0 %v25
  %71 = vmatprep.subr.mxu0 %v28
  %72 = vmatpush1.msra.mxu0 %v27
  %73 = vmatprep.subr.mxu0 %v30
  %74 = vmatpush1.msra.mxu0 %v29
  %75 = vmatprep.subr.mxu0 %v32
  %76 = vmatpush1.msra.mxu0 %v31
  %77 = vmatprep.subr.mxu0 %v34
  %78 = vmatpush1.msra.mxu0 %v33
  %79 = vmatprep.subr.mxu0 %v36
  %80 = vmatpush1.msra.mxu0 %v35
  %81 = vmatprep.subr.mxu0 %v38
  %82 = vmatpush1.msra.mxu0 %v37
  %83 = vmatprep.subr.mxu0 %v40
  %84 = vmatpush1.msra.mxu0 %v39
  %85 = vmatprep.subr.mxu0 %v42
  %86 = vmatpush1.msra.mxu0 %v41
  %87 = vmatprep.subr.mxu0 %v44
  %88 = vmatpush1.msra.mxu0 %v43
  %89 = vmatprep.subr.mxu0 %v46
  %90 = vmatpush1.msra.mxu0 %v45
  %91 = vmatprep.subr.mxu0 %v48
  %92 = vmatpush1.msra.mxu0 %v47
  %93 = vmatprep.subr.mxu0 %v50
  %94 = vmatpush1.msra.mxu0 %v49
  %95 = vmatprep.subr.mxu0 %v52
  %96 = vmatpush1.msra.mxu0 %v51
  %97 = vmatprep.subr.mxu0 0.0
  %98 = vmatpush1.msra.mxu0 0.0
  %99 = vmatprep.subr.mxu0 0.0
  %100 = vmatpush1.msra.mxu0 0.0
  %101 = vmatprep.subr.mxu0 0.0
  %102 = vmatpush1.msra.mxu0 0.0
  %103 = vmatprep.subr.mxu0 0.0
  %104 = vmatpush1.msra.mxu0 0.0
  %105 = vmatprep.subr.mxu0 0.0
  %106 = vmatpush1.msra.mxu0 0.0
  %107 = vmatprep.subr.mxu0 0.0
  %108 = vmatpush1.msra.mxu0 0.0
  %109 = vmatprep.subr.mxu0 0.0
  %110 = vmatpush1.msra.mxu0 0.0
  %111 = vmatprep.subr.mxu0 0.0
  %112 = vmatpush1.msra.mxu0 0.0
  %113 = vmatprep.subr.mxu0 0.0
  %114 = vmatpush1.msra.mxu0 0.0
  %115 = vmatprep.subr.mxu0 0.0
  %116 = vmatpush1.msra.mxu0 0.0
  %117 = vmatprep.subr.mxu0 0.0
  %118 = vmatpush1.msra.mxu0 0.0
  %119 = vmatprep.subr.mxu0 0.0
  %120 = vmatpush1.msra.mxu0 0.0
  %121 = vmatprep.subr.mxu0 0.0
  %122 = vmatpush1.msra.mxu0 0.0
  %123 = vmatprep.subr.mxu0 0.0
  %124 = vmatpush1.msra.mxu0 0.0
  %125 = vmatprep.subr.mxu0 0.0
  %126 = vmatpush1.msra.mxu0 0.0
  %127 = vmatprep.subr.mxu0 0.0
  %128 = vmatpush1.msra.mxu0 0.0
  %129 = vmatprep.mubr.f32.mxu0 0.0
  %130 = vmatmul.mubr.f32.gmra.mrb[0].mxu0 %v20
  %v131 = vpop.f32.mrb[0].mxu0
  %v132 = vadd.f32 %v58, %v131
  %v133 = vpop.f32.mrb[0].mxu0
  %v134 = vadd.f32 %v62, %v133
  %135 = vdwg.mxu0
  %v136 = vtanh.pop %v132
  %v137 = vtanh.pop %v134
  %v138 = vld [vmem:[%s3] sm:$0xff]
  %v139 = vld [vmem:[%s3 + $0x8] sm:$0xff]
  %v140 = vld [vmem:[%s3 + $0x10] sm:$0xff]
  %v141 = vld [vmem:[%s3 + $0x18] sm:$0xff]
  %v142 = vld [vmem:[%s3 + $0x20] sm:$0xff]
  %v143 = vld [vmem:[%s3 + $0x28] sm:$0xff]
  %v144 = vld [vmem:[%s3 + $0x30] sm:$0xff]
  %v145 = vld [vmem:[%s3 + $0x38] sm:$0xff]
  %v146 = vld [vmem:[%s3 + $0x40] sm:$0xff]
  %v147 = vld [vmem:[%s3 + $0x48] sm:$0xff]
  %v148 = vld [vmem:[%s3 + $0x50] sm:$0xff]
  %v149 = vld [vmem:[%s3 + $0x58] sm:$0xff]
  %v150 = vld [vmem:[%s3 + $0x60] sm:$0xff]
  %v151 = vld [vmem:[%s3 + $0x68] sm:$0xff]
  %v152 = vld [vmem:[%s3 + $0x70] sm:$0xff]
  %v153 = vld [vmem:[%s3 + $0x78] sm:$0xff]
  %v154 = vld [vmem:[%s3 + $0x80] sm:$0xff]
  %v155 = vld [vmem:[%s3 + $0x88] sm:$0xff]
  %v156 = vld [vmem:[%s3 + $0x90] sm:$0xff]
  %v157 = vld [vmem:[%s3 + $0x98] sm:$0xff]
  %v158 = vld [vmem:[%s3 + $0xa0] sm:$0xff]
  %v159 = vld [vmem:[%s3 + $0xa8] sm:$0xff]
  %v160 = vld [vmem:[%s3 + $0xb0] sm:$0xff]
  %v161 = vld [vmem:[%s3 + $0xb8] sm:$0xff]
  %v162 = vld [vmem:[%s3 + $0xc0] sm:$0xff]
  %v163 = vld [vmem:[%s3 + $0xc8] sm:$0xff]
  %v164 = vld [vmem:[%s3 + $0xd0] sm:$0xff]
  %v165 = vld [vmem:[%s3 + $0xd8] sm:$0xff]
  %v166 = vld [vmem:[%s3 + $0xe0] sm:$0xff]
  %v167 = vld [vmem:[%s3 + $0xe8] sm:$0xff]
  %v168 = vld [vmem:[%s3 + $0xf0] sm:$0xff]
  %v169 = vld [vmem:[%s3 + $0xf8] sm:$0xff]
  %v170 = vld [vmem:[%s4] sm:$0x1]
  %v172 = vlaneseq
  %v173 = vshrl.u32 %v172, 7
  %v174 = vsub.s32 0, %v173
  %v175 = vrot.slane %v170, %v174
  %177 = vmatprep.subr.mxu0 0.0
  %178 = vmatpush1.msra.mxu0 %v138
  %179 = vmatprep.subr.mxu0 0.0
  %180 = vmatpush1.msra.mxu0 %v139
  %181 = vmatprep.subr.mxu0 0.0
  %182 = vmatpush1.msra.mxu0 %v140
  %183 = vmatprep.subr.mxu0 0.0
  %184 = vmatpush1.msra.mxu0 %v141
  %185 = vmatprep.subr.mxu0 0.0
  %186 = vmatpush1.msra.mxu0 %v142
  %187 = vmatprep.subr.mxu0 0.0
  %188 = vmatpush1.msra.mxu0 %v143
  %189 = vmatprep.subr.mxu0 0.0
  %190 = vmatpush1.msra.mxu0 %v144
  %191 = vmatprep.subr.mxu0 0.0
  %192 = vmatpush1.msra.mxu0 %v145
  %193 = vmatprep.subr.mxu0 0.0
  %194 = vmatpush1.msra.mxu0 %v146
  %195 = vmatprep.subr.mxu0 0.0
  %196 = vmatpush1.msra.mxu0 %v147
  %197 = vmatprep.subr.mxu0 0.0
  %198 = vmatpush1.msra.mxu0 %v148
  %199 = vmatprep.subr.mxu0 0.0
  %200 = vmatpush1.msra.mxu0 %v149
  %201 = vmatprep.subr.mxu0 0.0
  %202 = vmatpush1.msra.mxu0 %v150
  %203 = vmatprep.subr.mxu0 0.0
  %204 = vmatpush1.msra.mxu0 %v151
  %205 = vmatprep.subr.mxu0 0.0
  %206 = vmatpush1.msra.mxu0 %v152
  %207 = vmatprep.subr.mxu0 0.0
  %208 = vmatpush1.msra.mxu0 %v153
  %209 = vmatprep.subr.mxu0 0.0
  %210 = vmatpush1.msra.mxu0 %v154
  %211 = vmatprep.subr.mxu0 0.0
  %212 = vmatpush1.msra.mxu0 %v155
  %213 = vmatprep.subr.mxu0 0.0
  %214 = vmatpush1.msra.mxu0 %v156
  %215 = vmatprep.subr.mxu0 0.0
  %216 = vmatpush1.msra.mxu0 %v157
  %217 = vmatprep.subr.mxu0 0.0
  %218 = vmatpush1.msra.mxu0 %v158
  %219 = vmatprep.subr.mxu0 0.0
  %220 = vmatpush1.msra.mxu0 %v159
  %221 = vmatprep.subr.mxu0 0.0
  %222 = vmatpush1.msra.mxu0 %v160
  %223 = vmatprep.subr.mxu0 0.0
  %224 = vmatpush1.msra.mxu0 %v161
  %225 = vmatprep.subr.mxu0 0.0
  %226 = vmatpush1.msra.mxu0 %v162
  %227 = vmatprep.subr.mxu0 0.0
  %228 = vmatpush1.msra.mxu0 %v163
  %229 = vmatprep.subr.mxu0 0.0
  %230 = vmatpush1.msra.mxu0 %v164
  %231 = vmatprep.subr.mxu0 0.0
  %232 = vmatpush1.msra.mxu0 %v165
  %233 = vmatprep.subr.mxu0 0.0
  %234 = vmatpush1.msra.mxu0 %v166
  %235 = vmatprep.subr.mxu0 0.0
  %236 = vmatpush1.msra.mxu0 %v167
  %237 = vmatprep.subr.mxu0 0.0
  %238 = vmatpush1.msra.mxu0 %v168
  %239 = vmatprep.subr.mxu0 0.0
  %240 = vmatpush1.msra.mxu0 %v169
  %241 = vmatprep.mubr.f32.mxu0 %v137
  %242 = vmatmul.mubr.f32.gmra.mrb[0].mxu0 %v136
  %v243 = vpop.f32.mrb[0].mxu0
  %v244 = vadd.f32 %v175, %v243
  %v245 = vpop.f32.mrb[0].mxu0
  %246 = vdwg.mxu0
  %247 = vst [vmem:[%s5] sm:$0xf] %v244
  // Predicated region
  $region22: #{stacked_dense_forward.1} parent=0 // pred_check
    _
  $region23: #{stacked_dense_forward.1} parent=0 // pred_check_branch
    %249 = sbr.rel (0) target = $region25
  $region24: #{stacked_dense_forward.1} parent=0 // pred_region
    _
  $region25: #{stacked_dense_forward.1} parent=0 // pred_fallthru
    _
  // Predicated region
  $region26: #{stacked_dense_forward.1} parent=0 // pred_check
    _
  $region27: #{stacked_dense_forward.1} parent=0 // pred_check_branch
    %251 = sbr.rel (0) target = $region29
  $region28: #{stacked_dense_forward.1} parent=0 // pred_region
    _
  $region29: #{stacked_dense_forward.1} parent=0 // pred_fallthru
    _

</llo_original>
